<compile_context>
chip_gen: v7x
topology: tpu7x:2x2x1
jax: 0.10.0
libtpu: 0.0.40
codegen_flags: <defaults>
</compile_context>

<pallas_src>
import functools
import math

import jax
import jax.numpy as jnp
from jax.experimental import pallas as pl
from jax.experimental.pallas import tpu as pltpu


# --------------------------------------------------------------------------
# static-power helpers (VPU multiply chains, EUP only when unavoidable)
# --------------------------------------------------------------------------
def _int_pow(x, n):
    """x ** n for positive integer n via a multiply chain (VPU only)."""
    acc = None
    base = x
    while n > 0:
        if n & 1:
            acc = base if acc is None else acc * base
        n >>= 1
        if n:
            base = base * base
    return acc


def _pow_p(x, p):
    """x ** p for static p > 0, avoiding exp+log when possible."""
    if p == 1.0:
        return x
    if float(p).is_integer() and 1.0 <= p <= 32.0:
        return _int_pow(x, int(p))
    if float(2.0 * p).is_integer() and 0.0 < p <= 32.5:
        # half-integer: integer chain (VPU) * one sqrt (single EUP op/elem)
        n = int(p)
        s = jnp.sqrt(x)
        return s if n == 0 else _int_pow(x, n) * s
    # TODO(synk): general non-(half-)integer p costs exp+log per element and
    # makes the kernel EUP-bound at HBM-roofline element rates.
    return jnp.power(x, p)


def _root_p(x, p):
    """x ** (1/p) on the tiny (rows, G) result."""
    if p == 1.0:
        return x
    if p == 2.0:
        return jnp.sqrt(x)
    return jnp.power(x, 1.0 / p)


# --------------------------------------------------------------------------
# kernels
# --------------------------------------------------------------------------
def _gem_packed_kernel(x_ref, sel_ref, o_ref, *, p, eps, hw):
    """Lane-packed path: one block holds whole packed rows (G channels each).

    x_ref  : (t, G*hw)  lane-dense input tile
    sel_ref: (G*hw, G)  constant 0/1 channel selector (bf16), DMA'd once
    o_ref  : (t, G)     lane-dense output tile
    """
    x = x_ref[...].astype(jnp.float32)
    xp = _pow_p(jnp.maximum(x, eps), p)

    # Segmented per-channel sum on the otherwise-idle MXU. Split the f32
    # powered values into bf16 hi/lo parts (selector entries are exact 0/1)
    # so two bf16 passes reproduce the f32 sum regardless of default matmul
    # precision.  Garbage rows of a partial NC-tail block stay confined to
    # their own output rows (matmul M-rows are independent) and are dropped
    # by the partial writeback.
    xp_hi = xp.astype(jnp.bfloat16)
    xp_lo = (xp - xp_hi.astype(jnp.float32)).astype(jnp.bfloat16)
    sel = sel_ref[...]
    s = (jnp.dot(xp_hi, sel, preferred_element_type=jnp.float32) +
         jnp.dot(xp_lo, sel, preferred_element_type=jnp.float32))

    o_ref[...] = _root_p(s * (1.0 / hw), p).astype(o_ref.dtype)


def _gem_reduce_kernel(x_ref, o_ref, acc_ref, *, p, eps, hw, thw):
    """2-axis reduction path: grid = (nc_blocks, hw_blocks), axis 1 reduces."""
    k = pl.program_id(1)
    last = pl.num_programs(1) - 1

    @pl.when(k == 0)
    def _():
        acc_ref[...] = jnp.zeros_like(acc_ref)

    x = x_ref[...].astype(jnp.float32)
    xp = _pow_p(jnp.maximum(x, eps), p)

    if hw % thw != 0:
        # Tail mask only on the final spatial step (runtime gated), so the
        # steady-state step pays no iota/compare/select cost.
        @pl.when(k < last)
        def _():
            acc_ref[...] += jnp.sum(xp, axis=-1, keepdims=True)

        @pl.when(k == last)
        def _():
            col = jax.lax.broadcasted_iota(jnp.int32, xp.shape, dimension=1)
            xpm = jnp.where(k * thw + col < hw, xp, 0.0)
            acc_ref[...] += jnp.sum(xpm, axis=-1, keepdims=True)
    else:
        acc_ref[...] += jnp.sum(xp, axis=-1, keepdims=True)

    @pl.when(k == last)
    def _():
        o_ref[...] = _root_p(acc_ref[...] * (1.0 / hw), p).astype(o_ref.dtype)


# --------------------------------------------------------------------------
# wrapper
# --------------------------------------------------------------------------
def _vmem_capacity_bytes():
    """Chip VMEM capacity; conservative (v7x-sized) fallback if query fails."""
    try:
        cap = getattr(pltpu.get_tpu_info(), "vmem_capacity_bytes", None)
        if cap:
            return int(cap)
    except Exception:
        pass
    return 64 * 1024 * 1024


def _row_tile(rows, row_bytes, min_rows, budget):
    """Rows per block: fill the budget, never exceed rounded-up total rows,
    and keep >=2 blocks when possible (v7x 2-TC sharding of the parallel axis)."""
    t = max(min_rows, (budget // max(row_bytes, 1)) // min_rows * min_rows)
    t = min(t, pl.cdiv(rows, min_rows) * min_rows)
    if rows > min_rows:
        t = min(t, pl.cdiv(pl.cdiv(rows, 2), min_rows) * min_rows)
    return max(t, min_rows)


def generalized_mean_pooling(x, p=3.0, eps=1e-6, *,
                             nc_tile=None, hw_tile=None, pack=None):
    """GeM pooling with output_size=1: (N, C, H, W) -> (N, C, 1, 1)."""
    n, c, h, w = x.shape
    nc, hw = n * c, h * w
    itemsize = x.dtype.itemsize
    min_rows = 8 * max(1, 4 // itemsize)          # 8 (f32), 16 (bf16), 32 (i8)
    p = float(p)
    eps = float(eps)

    # Generation-aware budgets: 8 MiB tiles on 128 MiB-VMEM chips (v5e/v6e),
    # 4 MiB on v7x (64 MiB).  Tiles are double-buffered by Pallas.
    cap = _vmem_capacity_bytes()
    tile_bytes = max(2 << 20, min(8 << 20, cap // 16))
    vmem_limit = int(min(cap // 2, 64 << 20))

    int_p = float(p).is_integer()
    half_p = float(2.0 * p).is_integer()
    pow_trans = 0 if int_p else (nc * hw if half_p else 2 * nc * hw)
    root_trans = 0 if p == 1.0 else (nc if p == 2.0 else 2 * nc)

    # ---------------- lane-packed path (small / lane-sparse hw) ------------
    g_lane = 128 // math.gcd(hw, 128)             # min G with (G*hw) % 128 == 0
    G = math.gcd(nc, g_lane)                      # must also divide nc
    row_bytes = G * hw * itemsize
    sel_bytes = G * hw * G * 2                    # bf16 selector
    use_packed = (
        pack is not False and nc_tile is None and hw_tile is None
        and G > 1
        and min_rows * row_bytes <= tile_bytes    # whole packed row per block
        and sel_bytes <= (8 << 20)
    )

    if use_packed:
        nc_g = nc // G
        x2d = x.reshape(nc_g, G * hw)             # free reshape (row-major)
        seg = jnp.arange(G * hw, dtype=jnp.int32) // hw
        sel = (seg[:, None] == jnp.arange(G, dtype=jnp.int32)[None, :]
               ).astype(jnp.bfloat16)             # exact 0/1 in bf16

        t = _row_tile(nc_g, row_bytes, min_rows, tile_bytes)
        grid = (pl.cdiv(nc_g, t),)

        kernel = functools.partial(_gem_packed_kernel, p=p, eps=eps, hw=hw)
        cost = pl.CostEstimate(
            flops=4 * nc * hw * G + 6 * nc * hw,
            transcendentals=pow_trans + root_trans,
            bytes_accessed=nc * hw * itemsize + sel_bytes + nc * itemsize,
        )

        out2d = pl.pallas_call(
            kernel,
            out_shape=jax.ShapeDtypeStruct((nc_g, G), x.dtype),
            grid_spec=pltpu.PrefetchScalarGridSpec(
                num_scalar_prefetch=0,
                grid=grid,
                in_specs=[
                    pl.BlockSpec((t, G * hw), lambda i: (i, 0)),
                    # Constant selector: block index never changes, so it is
                    # DMA'd into VMEM exactly once.
                    pl.BlockSpec((G * hw, G), lambda i: (0, 0)),
                ],
                out_specs=pl.BlockSpec((t, G), lambda i: (i, 0)),
            ),
            compiler_params=pltpu.CompilerParams(
                dimension_semantics=("parallel",),
                vmem_limit_bytes=vmem_limit),
            cost_estimate=cost,
        )(x2d, sel)
        return out2d.reshape(n, c, 1, 1)

    # ---------------- 2-axis reduction path (large / dense hw) -------------
    x2d = x.reshape(nc, hw)

    if hw_tile is not None:
        thw = hw_tile
    elif hw * min_rows * itemsize <= tile_bytes:
        thw = hw                                   # whole spatial row per block
    else:
        thw = max(128, (tile_bytes // (min_rows * itemsize)) // 128 * 128)

    if nc_tile is not None:
        tnc = nc_tile
    else:
        tnc = _row_tile(nc, thw * itemsize, min_rows, tile_bytes)

    grid = (pl.cdiv(nc, tnc), pl.cdiv(hw, thw))
    kernel = functools.partial(_gem_reduce_kernel, p=p, eps=eps, hw=hw, thw=thw)
    cost = pl.CostEstimate(
        flops=5 * nc * hw,
        transcendentals=pow_trans + root_trans,
        bytes_accessed=nc * hw * itemsize + nc * itemsize,
    )

    # TODO(synk): if an xprof trace shows DMA gaps between grid steps, sweep
    # pipeline_mode=pl.Buffered(3) on the input BlockSpec.
    out2d = pl.pallas_call(
        kernel,
        out_shape=jax.ShapeDtypeStruct((nc, 1), x.dtype),
        grid_spec=pltpu.PrefetchScalarGridSpec(
            num_scalar_prefetch=0,
            grid=grid,
            in_specs=[pl.BlockSpec((tnc, thw), lambda i, k: (i, k))],
            out_specs=pl.BlockSpec((tnc, 1), lambda i, k: (i, 0)),
            scratch_shapes=[pltpu.VMEM((tnc, 1), jnp.float32)],
        ),
        compiler_params=pltpu.CompilerParams(
            dimension_semantics=("parallel", "arbitrary"),
            vmem_limit_bytes=vmem_limit),
        cost_estimate=cost,
    )(x2d)
    return out2d.reshape(n, c, 1, 1)


# --------------------------------------------------------------------------
# reference + tests
# --------------------------------------------------------------------------
def _reference(x, p=3.0, eps=1e-6):
    xc = jnp.maximum(x.astype(jnp.float32), eps) ** p
    m = jnp.mean(xc, axis=(2, 3), keepdims=True)
    return (m ** (1.0 / p)).astype(x.dtype)


if __name__ == "__main__":
    # GeneralizedMeanPooling(norm=3.0, output_size=1, eps=1e-6)
    p, eps = 3.0, 1e-6

    # 1) hw % 128 == 0 (already lane-dense) -> 2-axis path, whole-row blocks.
    x = jax.random.normal(jax.random.PRNGKey(0), (2, 4, 16, 16), jnp.float32)
    y = jax.block_until_ready(generalized_mean_pooling(x, p=p, eps=eps))
    assert y.shape == (2, 4, 1, 1)
    assert jnp.allclose(y, _reference(x, p, eps), rtol=1e-4, atol=1e-5)

    # 2) Classic GeM spatial extent (7x7, hw=49) -> lane-packed MXU path, G=128.
    x2 = jax.random.normal(jax.random.PRNGKey(1), (2, 128, 7, 7), jnp.float32)
    y2 = jax.block_until_ready(generalized_mean_pooling(x2, p=p, eps=eps))
    assert y2.shape == (2, 128, 1, 1)
    assert jnp.allclose(y2, _reference(x2, p, eps), rtol=1e-4, atol=1e-5)

    # 3) Odd nc / hw: partial lane packing (G=2) with an NC-tail padded block.
    x3 = jax.random.normal(jax.random.PRNGKey(2), (2, 5, 12, 12), jnp.float32)
    y3 = jax.block_until_ready(generalized_mean_pooling(x3, p=p, eps=eps))
    assert y3.shape == (2, 5, 1, 1)
    assert jnp.allclose(y3, _reference(x3, p, eps), rtol=1e-4, atol=1e-5)

    # 4) Force the 2-axis reduction path: spatial tiling + gated tail mask.
    y4 = jax.block_until_ready(
        generalized_mean_pooling(x3, p=p, eps=eps, nc_tile=8, hw_tile=128))
    assert jnp.allclose(y4, _reference(x3, p, eps), rtol=1e-4, atol=1e-5)

    print("KERNEL_OK")
</pallas_src>

<mosaic_0001>
module attributes {stable_mosaic.version = 11 : i64} {
  func.func @_gem_reduce_kernel(%arg0: i32, %arg1: i32, %arg2: memref<8x256xf32, #tpu.memory_space<vmem>>, %arg3: memref<8x1xf32, #tpu.memory_space<vmem>>, %arg4: memref<8x1xf32, #tpu.memory_space<vmem>>) attributes {dimension_semantics = [#tpu.dimension_semantics<parallel>, #tpu.dimension_semantics<arbitrary>], iteration_bounds = array<i64: 1, 1>, scalar_prefetch = 0 : i64, scratch_operands = 1 : i64, tpu.core_type = #tpu.core_type<tc>, window_params = [{transform_indices = @transform_0, window_bounds = array<i64: 8, 256>}, {transform_indices = @transform_1, window_bounds = array<i64: 8, 1>}]} {
    %c0_i32 = arith.constant 0 : i32
    %0 = arith.cmpi eq, %arg1, %c0_i32 : i32
    %1 = arith.extui %0 : i1 to i32
    %c0_i32_0 = arith.constant 0 : i32
    %2 = arith.cmpi ne, %1, %c0_i32_0 : i32
    scf.if %2 {
      %cst_9 = arith.constant 0.000000e+00 : f32
      %16 = vector.broadcast %cst_9 : f32 to vector<8x1xf32>
      %c0_10 = arith.constant 0 : index
      %c0_11 = arith.constant 0 : index
      %17 = vector.load %arg4[%c0_10, %c0_11] : memref<8x1xf32, #tpu.memory_space<vmem>>, vector<8x1xf32>
      tpu.vector_store %arg4[%c0_10, %c0_11], %16 {strides = array<i32>} : memref<8x1xf32, #tpu.memory_space<vmem>>, vector<8x1xf32>,
    } else {
    }
    %c0 = arith.constant 0 : index
    %c0_1 = arith.constant 0 : index
    %3 = vector.load %arg2[%c0, %c0_1] : memref<8x256xf32, #tpu.memory_space<vmem>>, vector<8x256xf32>
    %cst = arith.constant 9.99999997E-7 : f32
    %4 = vector.broadcast %cst : f32 to vector<8x256xf32>
    %5 = arith.maximumf %3, %4 : vector<8x256xf32>
    %6 = arith.mulf %5, %5 : vector<8x256xf32>
    %7 = arith.mulf %5, %6 : vector<8x256xf32>
    %c0_2 = arith.constant 0 : index
    %c0_3 = arith.constant 0 : index
    %8 = vector.load %arg4[%c0_2, %c0_3] : memref<8x1xf32, #tpu.memory_space<vmem>>, vector<8x1xf32>
    %cst_4 = arith.constant dense<0.000000e+00> : vector<8xf32>
    %9 = vector.multi_reduction <add>, %7, %cst_4 [1] : vector<8x256xf32> to vector<8xf32>
    %10 = vector.shape_cast %9 : vector<8xf32> to vector<8x1xf32>
    %11 = arith.addf %8, %10 : vector<8x1xf32>
    %c0_5 = arith.constant 0 : index
    %c0_6 = arith.constant 0 : index
    %12 = vector.load %arg4[%c0_5, %c0_6] : memref<8x1xf32, #tpu.memory_space<vmem>>, vector<8x1xf32>
    tpu.vector_store %arg4[%c0_5, %c0_6], %11 {strides = array<i32>} : memref<8x1xf32, #tpu.memory_space<vmem>>, vector<8x1xf32>,
    %c0_i32_7 = arith.constant 0 : i32
    %13 = arith.cmpi eq, %arg1, %c0_i32_7 : i32
    %14 = arith.extui %13 : i1 to i32
    %c0_i32_8 = arith.constant 0 : i32
    %15 = arith.cmpi ne, %14, %c0_i32_8 : i32
    scf.if %15 {
      %c0_9 = arith.constant 0 : index
      %c0_10 = arith.constant 0 : index
      %16 = vector.load %arg4[%c0_9, %c0_10] : memref<8x1xf32, #tpu.memory_space<vmem>>, vector<8x1xf32>
      %cst_11 = arith.constant 3.906250e-03 : f32
      %17 = vector.broadcast %cst_11 : f32 to vector<8x1xf32>
      %18 = arith.mulf %16, %17 : vector<8x1xf32>
      %cst_12 = arith.constant 0.333333343 : f32
      %19 = vector.broadcast %cst_12 : f32 to vector<8x1xf32>
      %20 = math.powf %18, %19 : vector<8x1xf32>
      %c0_13 = arith.constant 0 : index
      %c0_14 = arith.constant 0 : index
      %21 = vector.load %arg3[%c0_13, %c0_14] : memref<8x1xf32, #tpu.memory_space<vmem>>, vector<8x1xf32>
      tpu.vector_store %arg3[%c0_13, %c0_14], %20 {strides = array<i32>} : memref<8x1xf32, #tpu.memory_space<vmem>>, vector<8x1xf32>,
    } else {
    }
    return
  }
  func.func @transform_0(%arg0: i32, %arg1: i32) -> (i32, i32) {
    %c0_i32 = arith.constant 0 : i32
    return %arg0, %arg1 : i32, i32
  }
  func.func @transform_1(%arg0: i32, %arg1: i32) -> (i32, i32) {
    %c0_i32 = arith.constant 0 : i32
    %c0_i32_0 = arith.constant 0 : i32
    return %arg0, %c0_i32 : i32, i32
  }
}

</mosaic_0001>

<llo_original>
// kernel: tpu_custom_call.1
$region0: #{tpu_custom_call.1}
  #allocation0 [shape = 'u32[]', space=smem, size = 0x4, offset = 0x4, fixed_abs, tag = 'smem constant byte address 0x4 - core index']
  #allocation1 [shape = 'u32[144,128]{1,0:T(1,128)}', space=vmem, size = 0x12000, scoped, tag = 'internal scratch']
  #allocation2 [shape = 'f32[8,1]{1,0:T(8,128)}', space=vmem, size = 0x1000, scoped, tag = 'scratch operand']
  %s0 = inlined_call_operand.hbm [shape: f32[8,256], index: 0, kind: input, shape index: {}]
  %s1 = inlined_call_operand.vmem [shape: f32[8,1], index: 1, kind: output, shape index: {}]
  %s2 = sld [smem:[#allocation0]]
  $region26: #{tpu_custom_call.1} parent=0
    _
  %s4 = ssub.s32 1, %s2
  %s5 = scalar_select 0, %s4, %s2
  $region1: #{tpu_custom_call.1} parent=0
    #allocation3 [shape = 'u8[8192]{0}', space=vmem, size = 0x2000, scoped, tag = 'input window, operand 0, single buffered']
    #allocation4 [shape = 's32[1]{0}', space=sflag, size = 0x4, scoped, tag = 'scoped memory for tpu_custom_call.1']
    %6 = vsyncpa [#allocation4], 0
    // Predicated region
    $region2: #{tpu_custom_call.1} parent=1 // pred_check
      _
    $region3: #{tpu_custom_call.1} parent=1 // pred_check_branch
      %8 = sbr.rel (0) target = $region5
    $region4: #{tpu_custom_call.1} parent=1 // pred_region
      %s10 = ssub.s32 256, 256
      %11 = vsyncadd [#allocation4], %s10
      %s13 = sshll.u32 [#allocation3], 4
      %s14 = int_to_ptr.vmem [resolvable:$true] %s13
      %16 = dma.hbm_to_vmem [thread:$0]  %s0, 256, %s14, [#allocation4]
    $region5: #{tpu_custom_call.1} parent=1 // pred_fallthru
      _
    // Predicated region
    $region6: #{tpu_custom_call.1} parent=1 // pred_check
      _
    $region7: #{tpu_custom_call.1} parent=1 // pred_check_branch
      %18 = sbr.rel (0) target = $region9
    $region8: #{tpu_custom_call.1} parent=1 // pred_region
      %19 = dma.done [#allocation4], 256
    $region9: #{tpu_custom_call.1} parent=1 // pred_fallthru
      _
    %p20 = scmp.eq.s32.totalorder 0, 0
    // Predicated region
    $region10: #{tpu_custom_call.1} parent=1 // pred_check
      %p21 = pneg %p20
    $region11: #{tpu_custom_call.1} parent=1 // pred_check_branch
      %23 = sbr.rel (%p21) target = $region13
    $region12: #{tpu_custom_call.1} parent=1 // pred_region
      %vm24 = vcmask 7168
      %25 = vst.msk [vmem:[#allocation2] sm:$0xff] %vm24, 0.0
    $region13: #{tpu_custom_call.1} parent=1 // pred_fallthru
      _
    %v26 = vld [vmem:[#allocation3] sm:$0xff]
    %v27 = vld [vmem:[#allocation3 + $0x8] sm:$0xff]
    %v28 = vmax.f32 %v26, 1e-06
    %v29 = vmax.f32 %v27, 1e-06
    %v30 = vmul.f32 %v28, %v28
    %v31 = vmul.f32 %v29, %v29
    %v32 = vmul.f32 %v28, %v30
    %v33 = vmul.f32 %v29, %v31
    %v34 = vld [vmem:[#allocation2] sm:$0xff]
    %v35 = vadd.f32 %v32, %v33
    %36 = vadd.xlane.f32.xlu0 %v35
    %v37 = vpop.xlane.xlu0 %36
    %v38 = vadd.f32 %v34, %v37
    %vm39 = vcmask 7168
    %40 = vst.msk [vmem:[#allocation2] sm:$0xff] %vm39, %v38
    // Predicated region
    $region14: #{tpu_custom_call.1} parent=1 // pred_check
      %p41 = pneg %p20
    $region15: #{tpu_custom_call.1} parent=1 // pred_check_branch
      %43 = sbr.rel (%p41) target = $region17
    $region16: #{tpu_custom_call.1} parent=1 // pred_region
      %v44 = vld [vmem:[#allocation2] sm:$0xff]
      %v45 = vmul.f32 %v44, 0.00390625
      %v46 = vpow.f32 %v45, 0.33333334
      %47 = vst.msk [vmem:[%s1] sm:$0xff] %vm39, %v46
    $region17: #{tpu_custom_call.1} parent=1 // pred_fallthru
      _
    // Predicated region
    $region18: #{tpu_custom_call.1} parent=1 // pred_check
      _
    $region19: #{tpu_custom_call.1} parent=1 // pred_check_branch
      %49 = sbr.rel (0) target = $region21
    $region20: #{tpu_custom_call.1} parent=1 // pred_region
      _
    $region21: #{tpu_custom_call.1} parent=1 // pred_fallthru
      _
    // Predicated region
    $region22: #{tpu_custom_call.1} parent=1 // pred_check
      _
    $region23: #{tpu_custom_call.1} parent=1 // pred_check_branch
      %51 = sbr.rel (0) target = $region25
    $region24: #{tpu_custom_call.1} parent=1 // pred_region
      _
    $region25: #{tpu_custom_call.1} parent=1 // pred_fallthru
      _
    %52 = vsyncpa [#allocation4], 1

</llo_original>
